<compile_context>
chip_gen: v7x
topology: tpu7x:2x2x1
jax: 0.10.0
libtpu: 0.0.40
codegen_flags: <defaults>
</compile_context>

<pallas_src>
import functools

import jax
import jax.numpy as jnp
from jax.experimental import pallas as pl
from jax.experimental.pallas import tpu as pltpu

HIDDEN = 100          # logical hidden width of the PyTorch module
H_PAD = 128           # lane-padded hidden width used inside the kernels
NUM_CLASSES = 2
BN_EPS = 1e-5
# Below this input_dim, recomputing x @ w1 in pass 1 is cheaper than
# round-tripping the (B, 128) hidden activations through HBM.
RECOMPUTE_MAX_D = 256


def _vmem_limit_bytes():
    """Generation-aware scoped-VMEM limit: ~half of physical, capped at 64 MiB."""
    try:
        cap = pltpu.get_tpu_info().vmem_capacity_bytes
    except Exception:
        cap = 64 * 1024 * 1024   # conservative fallback (v7x-sized VMEM)
    return max(16 * 1024 * 1024, min(cap // 2, 64 * 1024 * 1024))


def _choose_tile(batch, per_row_bytes, fixed_bytes, budget):
    """Largest batch tile that divides B and keeps double-buffered tiles in budget."""
    for tb in (4096, 2048, 1024, 512, 256, 128, 64, 32, 16, 8):
        if tb <= batch and batch % tb == 0:
            if tb * per_row_bytes + fixed_bytes <= budget:
                return tb
    return batch  # small / odd batch: single full-extent block


# ---------------------------------------------------------------------------
# Fused single-call path (small input_dim): grid = (pass, batch_tile)
# ---------------------------------------------------------------------------
def _fused_kernel(x_ref, w1_ref, gamma_ref, beta_ref, w2_ref, b2_ref,
                  out_ref, stats_ref, ss_ref, *, batch_size):
    p = pl.program_id(0)   # 0: accumulate batch stats, 1: produce outputs
    i = pl.program_id(1)   # batch tile

    @pl.when((p == 0) & (i == 0))
    def _init_stats():
        stats_ref[...] = jnp.zeros_like(stats_ref)

    # Recompute h = x @ w1 in both passes (bf16 operands, f32 accumulation on
    # the MXU) -- cheaper than an HBM round trip of h for small input_dim.
    h = jnp.dot(x_ref[...].astype(jnp.bfloat16), w1_ref[...],
                preferred_element_type=jnp.float32)          # (tb, H_PAD) f32

    @pl.when(p == 0)
    def _accumulate():
        stats_ref[0:1, :] += jnp.sum(h, axis=0, keepdims=True)
        stats_ref[1:2, :] += jnp.sum(h * h, axis=0, keepdims=True)

    @pl.when((p == 1) & (i == 0))
    def _fold_bn():  # hoisted once: BN folded into a single scale/shift FMA
        inv_b = jnp.float32(1.0 / batch_size)
        mean = stats_ref[0:1, :] * inv_b
        var = jnp.maximum(stats_ref[1:2, :] * inv_b - mean * mean, 0.0)
        scale = gamma_ref[...] * jax.lax.rsqrt(var + BN_EPS)
        ss_ref[0:1, :] = scale
        ss_ref[1:2, :] = beta_ref[...] - mean * scale

    @pl.when(p == 1)
    def _produce():
        h_act = jnp.maximum(h * ss_ref[0:1, :] + ss_ref[1:2, :], 0.0)
        logits = (jnp.dot(h_act, w2_ref[...], preferred_element_type=jnp.float32)
                  + b2_ref[...])
        # 2-class log_softmax via static column slices (no lane reductions).
        l0 = logits[:, 0:1]
        l1 = logits[:, 1:2]
        m = jnp.maximum(l0, l1)
        lse = m + jnp.log(jnp.exp(l0 - m) + jnp.exp(l1 - m))
        out_ref[...] = logits - lse


def _forward_fused(x, w1p, gp, bp, w2p, b2, tb, vmem_limit):
    B, D = x.shape
    nt = B // tb
    kernel = functools.partial(_fused_kernel, batch_size=B)
    return pl.pallas_call(
        kernel,
        out_shape=jax.ShapeDtypeStruct((B, NUM_CLASSES), jnp.float32),
        grid=(2, nt),
        in_specs=[
            pl.BlockSpec((tb, D), lambda p, i: (i, 0)),
            pl.BlockSpec((D, H_PAD), lambda p, i: (0, 0)),
            pl.BlockSpec((1, H_PAD), lambda p, i: (0, 0)),
            pl.BlockSpec((1, H_PAD), lambda p, i: (0, 0)),
            pl.BlockSpec((H_PAD, NUM_CLASSES), lambda p, i: (0, 0)),
            pl.BlockSpec((1, NUM_CLASSES), lambda p, i: (0, 0)),
        ],
        # During pass 0 every step maps to output block 0 (never written, never
        # flushed); real data is written in pass 1 only.
        out_specs=pl.BlockSpec((tb, NUM_CLASSES), lambda p, i: (i * p, 0)),
        scratch_shapes=[pltpu.VMEM((2, H_PAD), jnp.float32),   # sum / sumsq
                        pltpu.VMEM((2, H_PAD), jnp.float32)],  # scale / shift
        # The shared VMEM stats accumulator requires sequential execution; on
        # v7x, use mode="store_h" if megacore sharding matters more than fusion.
        compiler_params=pltpu.CompilerParams(
            dimension_semantics=("arbitrary", "arbitrary"),
            vmem_limit_bytes=vmem_limit),
        cost_estimate=pl.CostEstimate(
            flops=4 * B * D * H_PAD + 8 * B * H_PAD + 2 * B * H_PAD * NUM_CLASSES,
            transcendentals=3 * B + H_PAD,
            bytes_accessed=2 * B * D * x.dtype.itemsize
                           + B * NUM_CLASSES * 4 + D * H_PAD * 2),
    )(x, w1p, gp, bp, w2p, b2)


# ---------------------------------------------------------------------------
# Two-call path (large input_dim): bf16 h store + per-tile partial stats
# ---------------------------------------------------------------------------
def _phase1_store_kernel(x_ref, w1_ref, h_ref, part_ref):
    h = jnp.dot(x_ref[...].astype(jnp.bfloat16), w1_ref[...],
                preferred_element_type=jnp.float32)
    h_ref[...] = h.astype(jnp.bfloat16)          # halves the intermediate traffic
    part_ref[0:1, :] = jnp.sum(h, axis=0, keepdims=True)
    part_ref[1:2, :] = jnp.sum(h * h, axis=0, keepdims=True)


def _phase2_store_kernel(h_ref, scale_ref, shift_ref, w2_ref, b2_ref, out_ref):
    h = h_ref[...].astype(jnp.float32)
    h_act = jnp.maximum(h * scale_ref[...] + shift_ref[...], 0.0)
    logits = (jnp.dot(h_act, w2_ref[...], preferred_element_type=jnp.float32)
              + b2_ref[...])
    l0 = logits[:, 0:1]
    l1 = logits[:, 1:2]
    m = jnp.maximum(l0, l1)
    lse = m + jnp.log(jnp.exp(l0 - m) + jnp.exp(l1 - m))
    out_ref[...] = logits - lse


def _forward_store_h(x, w1p, gp, bp, w2p, b2, tb, vmem_limit):
    B, D = x.shape
    nt = B // tb

    h, partials = pl.pallas_call(
        _phase1_store_kernel,
        out_shape=(jax.ShapeDtypeStruct((B, H_PAD), jnp.bfloat16),
                   jax.ShapeDtypeStruct((nt, 2, H_PAD), jnp.float32)),
        grid=(nt,),
        in_specs=[
            pl.BlockSpec((tb, D), lambda i: (i, 0)),
            pl.BlockSpec((D, H_PAD), lambda i: (0, 0)),
        ],
        out_specs=(
            pl.BlockSpec((tb, H_PAD), lambda i: (i, 0)),
            pl.BlockSpec((None, 2, H_PAD), lambda i: (i, 0, 0)),  # per-tile partials
        ),
        compiler_params=pltpu.CompilerParams(
            dimension_semantics=("parallel",),        # megacore-shardable on v7x
            vmem_limit_bytes=vmem_limit),
        cost_estimate=pl.CostEstimate(
            flops=2 * B * D * H_PAD + 4 * B * H_PAD,
            transcendentals=0,
            bytes_accessed=B * D * x.dtype.itemsize + B * H_PAD * 2
                           + D * H_PAD * 2),
    )(x, w1p)

    # Tiny cross-tile reduction + BN folding in plain XLA (nt x 1 KiB).
    stats = jnp.sum(partials, axis=0)
    inv_b = jnp.float32(1.0 / B)
    mean = stats[0:1, :] * inv_b
    var = jnp.maximum(stats[1:2, :] * inv_b - mean * mean, 0.0)
    scale = gp * jax.lax.rsqrt(var + BN_EPS)
    shift = bp - mean * scale

    return pl.pallas_call(
        _phase2_store_kernel,
        out_shape=jax.ShapeDtypeStruct((B, NUM_CLASSES), jnp.float32),
        grid=(nt,),
        in_specs=[
            pl.BlockSpec((tb, H_PAD), lambda i: (i, 0)),
            pl.BlockSpec((1, H_PAD), lambda i: (0, 0)),
            pl.BlockSpec((1, H_PAD), lambda i: (0, 0)),
            pl.BlockSpec((H_PAD, NUM_CLASSES), lambda i: (0, 0)),
            pl.BlockSpec((1, NUM_CLASSES), lambda i: (0, 0)),
        ],
        out_specs=pl.BlockSpec((tb, NUM_CLASSES), lambda i: (i, 0)),
        compiler_params=pltpu.CompilerParams(
            dimension_semantics=("parallel",),
            vmem_limit_bytes=vmem_limit),
        cost_estimate=pl.CostEstimate(
            flops=4 * B * H_PAD + 2 * B * H_PAD * NUM_CLASSES + 8 * B,
            transcendentals=3 * B,
            bytes_accessed=B * H_PAD * 2 + B * NUM_CLASSES * 4),
    )(h, scale, shift, w2p, b2)


# ---------------------------------------------------------------------------
# Public wrapper
# ---------------------------------------------------------------------------
def discriminator_forward(x, params, tb=None, mode="auto"):
    """x: [B, input_dim] (f32 or bf16). Returns log-probabilities [B, 2]."""
    w1, b1, gamma, beta, w2, b2 = params
    del b1  # exactly cancelled by training-mode BatchNorm mean subtraction
    B, D = x.shape

    # Zero-pad hidden dim 100 -> 128 (full-lane VPU/MXU); padded w1 columns,
    # gamma, beta and w2 rows are zero, so padded channels stay exactly zero
    # through BN/ReLU and contribute nothing.
    w1p = jnp.pad(w1, ((0, 0), (0, H_PAD - HIDDEN))).astype(jnp.bfloat16)
    gp = jnp.pad(gamma, ((0, 0), (0, H_PAD - HIDDEN)))
    bp = jnp.pad(beta, ((0, 0), (0, H_PAD - HIDDEN)))
    w2p = jnp.pad(w2, ((0, H_PAD - HIDDEN), (0, 0)))

    if mode == "auto":
        mode = "fused" if D < RECOMPUTE_MAX_D else "store_h"

    vmem_limit = _vmem_limit_bytes()
    budget = int(0.6 * vmem_limit)
    xb = x.dtype.itemsize
    if mode == "fused":
        per_row = 2 * D * xb + 2 * NUM_CLASSES * 4
    else:
        per_row = 2 * D * xb + 2 * H_PAD * 2 + 2 * NUM_CLASSES * 4
    fixed = D * H_PAD * 2 + 8 * H_PAD * 4 + H_PAD * NUM_CLASSES * 4

    if tb is None:
        tb = _choose_tile(B, per_row, fixed, budget)
    assert B % tb == 0, f"batch {B} must be divisible by tile {tb}"

    if mode == "fused":
        return _forward_fused(x, w1p, gp, bp, w2p, b2, tb, vmem_limit)
    return _forward_store_h(x, w1p, gp, bp, w2p, b2, tb, vmem_limit)


# ---------------------------------------------------------------------------
# Params + references
# ---------------------------------------------------------------------------
def init_params(key, input_dim):
    """PyTorch-default-style init (uniform +-1/sqrt(fan_in); BN gamma=1, beta=0)."""
    k1, k2, k3, k4 = jax.random.split(key, 4)
    bound1 = 1.0 / jnp.sqrt(jnp.float32(input_dim))
    w1 = jax.random.uniform(k1, (input_dim, HIDDEN), jnp.float32, -bound1, bound1)
    b1 = jax.random.uniform(k2, (1, HIDDEN), jnp.float32, -bound1, bound1)
    gamma = jnp.ones((1, HIDDEN), jnp.float32)
    beta = jnp.zeros((1, HIDDEN), jnp.float32)
    bound2 = 1.0 / jnp.sqrt(jnp.float32(HIDDEN))
    w2 = jax.random.uniform(k3, (HIDDEN, NUM_CLASSES), jnp.float32, -bound2, bound2)
    b2 = jax.random.uniform(k4, (1, NUM_CLASSES), jnp.float32, -bound2, bound2)
    return (w1, b1, gamma, beta, w2, b2)


def _reference_f32(x, params):
    """Pure-f32 pure-JAX reference of the PyTorch forward pass."""
    w1, b1, gamma, beta, w2, b2 = params
    h = x @ w1 + b1
    mean = jnp.mean(h, axis=0, keepdims=True)
    var = jnp.mean((h - mean) ** 2, axis=0, keepdims=True)
    h = (h - mean) / jnp.sqrt(var + BN_EPS) * gamma + beta
    h = jnp.maximum(h, 0.0)
    logits = h @ w2 + b2
    return jax.nn.log_softmax(logits, axis=1)


def _reference_matched(x, params, store_h=False):
    """Pure-JAX reference mirroring the kernel numerics (bf16 first matmul,
    one-pass variance, folded BN affine, b1 dropped; optional bf16 h store)."""
    w1, b1, gamma, beta, w2, b2 = params
    B = x.shape[0]
    h = jnp.dot(x.astype(jnp.bfloat16), w1.astype(jnp.bfloat16),
                preferred_element_type=jnp.float32)
    mean = jnp.sum(h, axis=0, keepdims=True) / B
    var = jnp.maximum(jnp.sum(h * h, axis=0, keepdims=True) / B - mean * mean, 0.0)
    scale = gamma * jax.lax.rsqrt(var + BN_EPS)
    shift = beta - mean * scale
    if store_h:
        h = h.astype(jnp.bfloat16).astype(jnp.float32)
    h = jnp.maximum(h * scale + shift, 0.0)
    logits = h @ w2 + b2
    return jax.nn.log_softmax(logits, axis=1)


if __name__ == "__main__":
    key = jax.random.PRNGKey(0)
    k_x, k_p, k_x2 = jax.random.split(key, 3)

    # Small demo shape consistent with the module (MLP on [B, input_dim]).
    batch, input_dim = 8, 32
    x = jax.random.normal(k_x, (batch, input_dim), dtype=jnp.float32)
    params = init_params(k_p, input_dim)

    # Fused single-call path (default for small input_dim).
    out = jax.block_until_ready(discriminator_forward(x, params))
    assert out.shape == (batch, NUM_CLASSES)
    assert bool(jnp.all(jnp.isfinite(out)))
    assert jnp.allclose(out, _reference_matched(x, params), atol=1e-3, rtol=1e-3)
    assert jnp.allclose(out, _reference_f32(x, params), atol=5e-2, rtol=5e-2)

    # Multi-tile batch: exercises cross-tile stats accumulation + hoisted BN fold.
    batch2 = 256
    x2 = jax.random.normal(k_x2, (batch2, input_dim), dtype=jnp.float32)
    out2 = jax.block_until_ready(discriminator_forward(x2, params, tb=64))
    assert out2.shape == (batch2, NUM_CLASSES)
    assert jnp.allclose(out2, _reference_matched(x2, params), atol=1e-3, rtol=1e-3)
    assert jnp.allclose(out2, _reference_f32(x2, params), atol=5e-2, rtol=5e-2)

    # Large-input-dim path (bf16 h store + per-tile partial stats, "parallel"
    # batch axis), forced here to exercise the code path on small shapes.
    out3 = jax.block_until_ready(
        discriminator_forward(x2, params, tb=64, mode="store_h"))
    assert out3.shape == (batch2, NUM_CLASSES)
    assert jnp.allclose(out3, _reference_matched(x2, params, store_h=True),
                        atol=2e-3, rtol=2e-3)
    # Looser vs the f32 reference: this path also rounds h to bf16.
    assert jnp.allclose(out3, _reference_f32(x2, params), atol=1e-1, rtol=1e-1)

    print("KERNEL_OK")
</pallas_src>

<mosaic_0001>
module attributes {stable_mosaic.version = 11 : i64} {
  func.func @_fused_kernel(%arg0: i32, %arg1: i32, %arg2: memref<8x32xf32, #tpu.memory_space<vmem>>, %arg3: memref<32x128xbf16, #tpu.memory_space<vmem>>, %arg4: memref<1x128xf32, #tpu.memory_space<vmem>>, %arg5: memref<1x128xf32, #tpu.memory_space<vmem>>, %arg6: memref<128x2xf32, #tpu.memory_space<vmem>>, %arg7: memref<1x2xf32, #tpu.memory_space<vmem>>, %arg8: memref<8x2xf32, #tpu.memory_space<vmem>>, %arg9: memref<2x128xf32, #tpu.memory_space<vmem>>, %arg10: memref<2x128xf32, #tpu.memory_space<vmem>>) attributes {dimension_semantics = [#tpu.dimension_semantics<arbitrary>, #tpu.dimension_semantics<arbitrary>], iteration_bounds = array<i64: 2, 1>, scalar_prefetch = 0 : i64, scratch_operands = 2 : i64, tpu.core_type = #tpu.core_type<tc>, window_params = [{transform_indices = @transform_0, window_bounds = array<i64: 8, 32>}, {pipeline_mode = #tpu.pipeline_mode<synchronous>, transform_indices = @transform_1, window_bounds = array<i64: 32, 128>}, {pipeline_mode = #tpu.pipeline_mode<synchronous>, transform_indices = @transform_2, window_bounds = array<i64: 1, 128>}, {pipeline_mode = #tpu.pipeline_mode<synchronous>, transform_indices = @transform_3, window_bounds = array<i64: 1, 128>}, {pipeline_mode = #tpu.pipeline_mode<synchronous>, transform_indices = @transform_4, window_bounds = array<i64: 128, 2>}, {pipeline_mode = #tpu.pipeline_mode<synchronous>, transform_indices = @transform_5, window_bounds = array<i64: 1, 2>}, {transform_indices = @transform_6, window_bounds = array<i64: 8, 2>}]} {
    %c0_i32 = arith.constant 0 : i32
    %0 = arith.cmpi eq, %arg0, %c0_i32 : i32
    %c0_i32_0 = arith.constant 0 : i32
    %1 = arith.cmpi eq, %arg1, %c0_i32_0 : i32
    %2 = arith.andi %0, %1 : i1
    %3 = arith.extui %2 : i1 to i32
    %c0_i32_1 = arith.constant 0 : i32
    %4 = arith.cmpi ne, %3, %c0_i32_1 : i32
    scf.if %4 {
      %cst_11 = arith.constant 0.000000e+00 : f32
      %20 = vector.broadcast %cst_11 : f32 to vector<2x128xf32>
      %c0_12 = arith.constant 0 : index
      %c0_13 = arith.constant 0 : index
      %21 = vector.load %arg9[%c0_12, %c0_13] : memref<2x128xf32, #tpu.memory_space<vmem>>, vector<2x128xf32>
      tpu.vector_store %arg9[%c0_12, %c0_13], %20 {strides = array<i32>} : memref<2x128xf32, #tpu.memory_space<vmem>>, vector<2x128xf32>,
    } else {
    }
    %c0 = arith.constant 0 : index
    %c0_2 = arith.constant 0 : index
    %5 = vector.load %arg2[%c0, %c0_2] : memref<8x32xf32, #tpu.memory_space<vmem>>, vector<8x32xf32>
    %6 = arith.truncf %5 : vector<8x32xf32> to vector<8x32xbf16>
    %c0_3 = arith.constant 0 : index
    %c0_4 = arith.constant 0 : index
    %7 = vector.load %arg3[%c0_3, %c0_4] : memref<32x128xbf16, #tpu.memory_space<vmem>>, vector<32x128xbf16>
    %cst = arith.constant dense<0.000000e+00> : vector<8x128xf32>
    %8 = tpu.matmul %6, %7, %cst {dimension_numbers = #tpu.dot_dimension_numbers<[1], [0], [0], [1], [0, 0, 1, 1], [], []>} : vector<8x32xbf16>, vector<32x128xbf16>, vector<8x128xf32> -> vector<8x128xf32>
    %c0_i32_5 = arith.constant 0 : i32
    %9 = arith.cmpi eq, %arg0, %c0_i32_5 : i32
    %10 = arith.extui %9 : i1 to i32
    %c0_i32_6 = arith.constant 0 : i32
    %11 = arith.cmpi ne, %10, %c0_i32_6 : i32
    scf.if %11 {
      %c0_11 = arith.constant 0 : index
      %c0_12 = arith.constant 0 : index
      %20 = vector.load %arg9[%c0_11, %c0_12] : memref<2x128xf32, #tpu.memory_space<vmem>>, vector<1x128xf32>
      %cst_13 = arith.constant dense<0.000000e+00> : vector<128xf32>
      %21 = vector.multi_reduction <add>, %8, %cst_13 [0] : vector<8x128xf32> to vector<128xf32>
      %22 = vector.shape_cast %21 : vector<128xf32> to vector<1x128xf32>
      %23 = arith.addf %20, %22 : vector<1x128xf32>
      %c0_14 = arith.constant 0 : index
      %c0_15 = arith.constant 0 : index
      %24 = vector.load %arg9[%c0_14, %c0_15] : memref<2x128xf32, #tpu.memory_space<vmem>>, vector<1x128xf32>
      tpu.vector_store %arg9[%c0_14, %c0_15], %23 {strides = array<i32>} : memref<2x128xf32, #tpu.memory_space<vmem>>, vector<1x128xf32>,
      %c1 = arith.constant 1 : index
      %c0_16 = arith.constant 0 : index
      %25 = vector.load %arg9[%c1, %c0_16] : memref<2x128xf32, #tpu.memory_space<vmem>>, vector<1x128xf32>
      %26 = arith.mulf %8, %8 : vector<8x128xf32>
      %cst_17 = arith.constant dense<0.000000e+00> : vector<128xf32>
      %27 = vector.multi_reduction <add>, %26, %cst_17 [0] : vector<8x128xf32> to vector<128xf32>
      %28 = vector.shape_cast %27 : vector<128xf32> to vector<1x128xf32>
      %29 = arith.addf %25, %28 : vector<1x128xf32>
      %c1_18 = arith.constant 1 : index
      %c0_19 = arith.constant 0 : index
      %30 = vector.load %arg9[%c1_18, %c0_19] : memref<2x128xf32, #tpu.memory_space<vmem>>, vector<1x128xf32>
      tpu.vector_store %arg9[%c1_18, %c0_19], %29 {strides = array<i32>} : memref<2x128xf32, #tpu.memory_space<vmem>>, vector<1x128xf32>,
    } else {
    }
    %c1_i32 = arith.constant 1 : i32
    %12 = arith.cmpi eq, %arg0, %c1_i32 : i32
    %c0_i32_7 = arith.constant 0 : i32
    %13 = arith.cmpi eq, %arg1, %c0_i32_7 : i32
    %14 = arith.andi %12, %13 : i1
    %15 = arith.extui %14 : i1 to i32
    %c0_i32_8 = arith.constant 0 : i32
    %16 = arith.cmpi ne, %15, %c0_i32_8 : i32
    scf.if %16 {
      %c0_11 = arith.constant 0 : index
      %c0_12 = arith.constant 0 : index
      %20 = vector.load %arg9[%c0_11, %c0_12] : memref<2x128xf32, #tpu.memory_space<vmem>>, vector<1x128xf32>
      %cst_13 = arith.constant 1.250000e-01 : f32
      %21 = vector.broadcast %cst_13 : f32 to vector<1x128xf32>
      %22 = arith.mulf %20, %21 : vector<1x128xf32>
      %c1 = arith.constant 1 : index
      %c0_14 = arith.constant 0 : index
      %23 = vector.load %arg9[%c1, %c0_14] : memref<2x128xf32, #tpu.memory_space<vmem>>, vector<1x128xf32>
      %cst_15 = arith.constant 1.250000e-01 : f32
      %24 = vector.broadcast %cst_15 : f32 to vector<1x128xf32>
      %25 = arith.mulf %23, %24 : vector<1x128xf32>
      %26 = arith.mulf %22, %22 : vector<1x128xf32>
      %27 = arith.subf %25, %26 : vector<1x128xf32>
      %cst_16 = arith.constant 0.000000e+00 : f32
      %28 = vector.broadcast %cst_16 : f32 to vector<1x128xf32>
      %29 = arith.maximumf %27, %28 : vector<1x128xf32>
      %c0_17 = arith.constant 0 : index
      %c0_18 = arith.constant 0 : index
      %30 = vector.load %arg4[%c0_17, %c0_18] : memref<1x128xf32, #tpu.memory_space<vmem>>, vector<1x128xf32>
      %cst_19 = arith.constant 9.99999974E-6 : f32
      %31 = vector.broadcast %cst_19 : f32 to vector<1x128xf32>
      %32 = arith.addf %29, %31 : vector<1x128xf32>
      %33 = math.rsqrt %32 : vector<1x128xf32>
      %34 = arith.mulf %30, %33 : vector<1x128xf32>
      %c0_20 = arith.constant 0 : index
      %c0_21 = arith.constant 0 : index
      %35 = vector.load %arg10[%c0_20, %c0_21] : memref<2x128xf32, #tpu.memory_space<vmem>>, vector<1x128xf32>
      tpu.vector_store %arg10[%c0_20, %c0_21], %34 {strides = array<i32>} : memref<2x128xf32, #tpu.memory_space<vmem>>, vector<1x128xf32>,
      %c0_22 = arith.constant 0 : index
      %c0_23 = arith.constant 0 : index
      %36 = vector.load %arg5[%c0_22, %c0_23] : memref<1x128xf32, #tpu.memory_space<vmem>>, vector<1x128xf32>
      %37 = arith.mulf %22, %34 : vector<1x128xf32>
      %38 = arith.subf %36, %37 : vector<1x128xf32>
      %c1_24 = arith.constant 1 : index
      %c0_25 = arith.constant 0 : index
      %39 = vector.load %arg10[%c1_24, %c0_25] : memref<2x128xf32, #tpu.memory_space<vmem>>, vector<1x128xf32>
      tpu.vector_store %arg10[%c1_24, %c0_25], %38 {strides = array<i32>} : memref<2x128xf32, #tpu.memory_space<vmem>>, vector<1x128xf32>,
    } else {
    }
    %c1_i32_9 = arith.constant 1 : i32
    %17 = arith.cmpi eq, %arg0, %c1_i32_9 : i32
    %18 = arith.extui %17 : i1 to i32
    %c0_i32_10 = arith.constant 0 : i32
    %19 = arith.cmpi ne, %18, %c0_i32_10 : i32
    scf.if %19 {
      %c0_11 = arith.constant 0 : index
      %c0_12 = arith.constant 0 : index
      %20 = vector.load %arg10[%c0_11, %c0_12] : memref<2x128xf32, #tpu.memory_space<vmem>>, vector<1x128xf32>
      %21 = vector.broadcast %20 : vector<1x128xf32> to vector<8x128xf32>
      %22 = arith.mulf %8, %21 : vector<8x128xf32>
      %c1 = arith.constant 1 : index
      %c0_13 = arith.constant 0 : index
      %23 = vector.load %arg10[%c1, %c0_13] : memref<2x128xf32, #tpu.memory_space<vmem>>, vector<1x128xf32>
      %24 = vector.broadcast %23 : vector<1x128xf32> to vector<8x128xf32>
      %25 = arith.addf %22, %24 : vector<8x128xf32>
      %cst_14 = arith.constant 0.000000e+00 : f32
      %26 = vector.broadcast %cst_14 : f32 to vector<8x128xf32>
      %27 = arith.maximumf %25, %26 : vector<8x128xf32>
      %c0_15 = arith.constant 0 : index
      %c0_16 = arith.constant 0 : index
      %28 = vector.load %arg6[%c0_15, %c0_16] : memref<128x2xf32, #tpu.memory_space<vmem>>, vector<128x2xf32>
      %cst_17 = arith.constant dense<0.000000e+00> : vector<8x2xf32>
      %29 = tpu.matmul %27, %28, %cst_17 {dimension_numbers = #tpu.dot_dimension_numbers<[1], [0], [0], [1], [0, 0, 1, 1], [], []>} : vector<8x128xf32>, vector<128x2xf32>, vector<8x2xf32> -> vector<8x2xf32>
      %c0_18 = arith.constant 0 : index
      %c0_19 = arith.constant 0 : index
      %30 = vector.load %arg7[%c0_18, %c0_19] : memref<1x2xf32, #tpu.memory_space<vmem>>, vector<1x2xf32>
      %31 = vector.broadcast %30 : vector<1x2xf32> to vector<8x2xf32>
      %32 = arith.addf %29, %31 : vector<8x2xf32>
      %33 = vector.extract_strided_slice %32 {offsets = [0, 0], sizes = [8, 1], strides = [1, 1]} : vector<8x2xf32> to vector<8x1xf32>
      %34 = vector.extract_strided_slice %32 {offsets = [0, 1], sizes = [8, 1], strides = [1, 1]} : vector<8x2xf32> to vector<8x1xf32>
      %35 = arith.maximumf %33, %34 : vector<8x1xf32>
      %36 = arith.subf %33, %35 : vector<8x1xf32>
      %37 = math.exp %36 : vector<8x1xf32>
      %38 = arith.subf %34, %35 : vector<8x1xf32>
      %39 = math.exp %38 : vector<8x1xf32>
      %40 = arith.addf %37, %39 : vector<8x1xf32>
      %41 = math.log %40 : vector<8x1xf32>
      %42 = arith.addf %35, %41 : vector<8x1xf32>
      %43 = vector.broadcast %42 : vector<8x1xf32> to vector<8x2xf32>
      %44 = arith.subf %32, %43 : vector<8x2xf32>
      %c0_20 = arith.constant 0 : index
      %c0_21 = arith.constant 0 : index
      %45 = vector.load %arg8[%c0_20, %c0_21] : memref<8x2xf32, #tpu.memory_space<vmem>>, vector<8x2xf32>
      tpu.vector_store %arg8[%c0_20, %c0_21], %44 {strides = array<i32>} : memref<8x2xf32, #tpu.memory_space<vmem>>, vector<8x2xf32>,
    } else {
    }
    return
  }
  func.func @transform_0(%arg0: i32, %arg1: i32) -> (i32, i32) {
    %c0_i32 = arith.constant 0 : i32
    %c0_i32_0 = arith.constant 0 : i32
    return %arg1, %c0_i32 : i32, i32
  }
  func.func @transform_1(%arg0: i32, %arg1: i32) -> (i32, i32) {
    %c0_i32 = arith.constant 0 : i32
    %c0_i32_0 = arith.constant 0 : i32
    %c0_i32_1 = arith.constant 0 : i32
    return %c0_i32, %c0_i32_0 : i32, i32
  }
  func.func @transform_2(%arg0: i32, %arg1: i32) -> (i32, i32) {
    %c0_i32 = arith.constant 0 : i32
    %c0_i32_0 = arith.constant 0 : i32
    %c0_i32_1 = arith.constant 0 : i32
    return %c0_i32, %c0_i32_0 : i32, i32
  }
  func.func @transform_3(%arg0: i32, %arg1: i32) -> (i32, i32) {
    %c0_i32 = arith.constant 0 : i32
    %c0_i32_0 = arith.constant 0 : i32
    %c0_i32_1 = arith.constant 0 : i32
    return %c0_i32, %c0_i32_0 : i32, i32
  }
  func.func @transform_4(%arg0: i32, %arg1: i32) -> (i32, i32) {
    %c0_i32 = arith.constant 0 : i32
    %c0_i32_0 = arith.constant 0 : i32
    %c0_i32_1 = arith.constant 0 : i32
    return %c0_i32, %c0_i32_0 : i32, i32
  }
  func.func @transform_5(%arg0: i32, %arg1: i32) -> (i32, i32) {
    %c0_i32 = arith.constant 0 : i32
    %c0_i32_0 = arith.constant 0 : i32
    %c0_i32_1 = arith.constant 0 : i32
    return %c0_i32, %c0_i32_0 : i32, i32
  }
  func.func @transform_6(%arg0: i32, %arg1: i32) -> (i32, i32) {
    %0 = arith.muli %arg1, %arg0 : i32
    %c0_i32 = arith.constant 0 : i32
    %c0_i32_0 = arith.constant 0 : i32
    return %0, %c0_i32 : i32, i32
  }
}

</mosaic_0001>

<llo_original>
// kernel: tpu_custom_call.1
$region0: #{tpu_custom_call.1}
  #allocation0 [shape = 'u32[]', space=smem, size = 0x4, offset = 0x4, fixed_abs, tag = 'smem constant byte address 0x4 - core index']
  #allocation1 [shape = 'u32[144,128]{1,0:T(1,128)}', space=vmem, size = 0x12000, scoped, tag = 'internal scratch']
  #allocation2 [shape = 'f32[2,128]{1,0:T(2,128)}', space=vmem, size = 0x400, scoped, tag = 'scratch operand']
  #allocation3 [shape = 'f32[2,128]{1,0:T(2,128)}', space=vmem, size = 0x400, scoped, tag = 'scratch operand']
  %s0 = inlined_call_operand.vmem [shape: f32[8,32], index: 0, kind: input, shape index: {}]
  %s1 = inlined_call_operand.vmem [shape: bf16[32,128], index: 1, kind: input, shape index: {}]
  %s2 = inlined_call_operand.vmem [shape: f32[1,128], index: 2, kind: input, shape index: {}]
  %s3 = inlined_call_operand.vmem [shape: f32[1,128], index: 3, kind: input, shape index: {}]
  %s4 = inlined_call_operand.vmem [shape: f32[128,2], index: 4, kind: input, shape index: {}]
  %s5 = inlined_call_operand.vmem [shape: f32[1,2], index: 5, kind: input, shape index: {}]
  %s6 = inlined_call_operand.vmem [shape: f32[8,2], index: 6, kind: output, shape index: {}]
  %s7 = sld [smem:[#allocation0]]
  $region73: #{tpu_custom_call.1} parent=0
    _
  %s9 = ssub.s32 1, %s7
  %s10 = scalar_select 0, %s9, %s7
  loop: start=0, step=1, limit=4
  $region2: #{tpu_custom_call.1} parent=0 // loop_pre_header
    _
  $region3: #{tpu_custom_call.1} parent=0 // loop_header
    %s12 = sphi 0, %s16
    %p13 = scmp.ge.s32.totalorder %s12, 4
    %s19 = sphi 0, %s31
    %s20 = sphi 0, %s27
    %s21 = sphi 0, %s19
    %s22 = sphi 0, %s20
    %s23 = sphi 0, %s21
    %s24 = sphi 0, %s22
    %s34 = sphi 0, %s36
    %s37 = sphi 0, %s34
    %s38 = sphi 0, %s37
    %s54 = sphi 0, %s38
    %s58 = sphi 0, %s58
    %s60 = sphi 0, %s58
    %s61 = sphi 0, %s60
    %s75 = sphi 0, %s61
    %s79 = sphi 0, %s79
    %s81 = sphi 0, %s79
    %s82 = sphi 0, %s81
    %s96 = sphi 0, %s82
    %s100 = sphi 0, %s100
    %s102 = sphi 0, %s100
    %s103 = sphi 0, %s102
    %s117 = sphi 0, %s103
    %s121 = sphi 0, %s121
    %s123 = sphi 0, %s121
    %s124 = sphi 0, %s123
    %s138 = sphi 0, %s124
    %s142 = sphi 0, %s142
    %s144 = sphi 0, %s142
    %s145 = sphi 0, %s144
    %s159 = sphi 0, %s145
    %s167 = sphi 0, %s169
    %s170 = sphi 0, %s167
    %s171 = sphi 0, %s170
    %s187 = sphi 0, %s171
  $region4: #{tpu_custom_call.1} parent=0 // loop_header_branch
    %15 = sbr.rel (%p13) target = $region8
  $region5: #{tpu_custom_call.1} parent=0 // loop_body
    %s17 = ssub.s32 %s12, 1
    %s18 = ssub.s32 %s12, 2
    %s25 = sadd.s32 1, %s20
    %p26 = scmp.ge.s32.totalorder %s25, 1
    %s27 = scalar_select %p26, 0, %s25
    %s28 = sadd.s32 1, %s19
    %s29 = scalar_select %p26, %s28, %s19
    %p30 = scmp.ge.s32.totalorder %s29, 2
    %s31 = scalar_select %p30, 0, %s29
    %s32 = ssub.s32 %s20, %s27
    %p33 = scmp.eq.s32.totalorder %s32, 0
    %s35 = sadd.s32 %s34, 1
    %s36 = scalar_select %p33, %s34, %s35
    %p39 = pneg %p33
    %p40 = scmp.eq.s32.totalorder %s12, 1
    %p41 = por %p39, %p40
    %p42 = scmp.ne.s32.totalorder %s34, %s37
    %p43 = scmp.eq.s32.totalorder %s12, 0
    %p44 = por %p42, %p43
    %p45 = scmp.ne.s32.totalorder %s34, %s37
    %p46 = scmp.eq.s32.totalorder %s17, 1
    %p47 = por %p45, %p46
    %p48 = scmp.ne.s32.totalorder %s37, %s38
    %p49 = scmp.eq.s32.totalorder %s17, 0
    %p50 = por %p48, %p49
    %p51 = scmp.ne.s32.totalorder %s37, %s38
    %p52 = scmp.eq.s32.totalorder %s18, 1
    %p53 = por %p51, %p52
    %p55 = scmp.ne.s32.totalorder %s38, %s54
    %p56 = scmp.eq.s32.totalorder %s18, 0
    %p57 = por %p55, %p56
    %s59 = sadd.s32 %s58, 1
    %p62 = scmp.eq.s32.totalorder %s12, 1
    %p63 = scmp.ne.s32.totalorder %s58, %s60
    %p64 = scmp.eq.s32.totalorder %s12, 0
    %p65 = por %p63, %p64
    %p66 = scmp.ne.s32.totalorder %s58, %s60
    %p67 = scmp.eq.s32.totalorder %s17, 1
    %p68 = por %p66, %p67
    %p69 = scmp.ne.s32.totalorder %s60, %s61
    %p70 = scmp.eq.s32.totalorder %s17, 0
    %p71 = por %p69, %p70
    %p72 = scmp.ne.s32.totalorder %s60, %s61
    %p73 = scmp.eq.s32.totalorder %s18, 1
    %p74 = por %p72, %p73
    %p76 = scmp.ne.s32.totalorder %s61, %s75
    %p77 = scmp.eq.s32.totalorder %s18, 0
    %p78 = por %p76, %p77
    %s80 = sadd.s32 %s79, 1
    %p83 = scmp.eq.s32.totalorder %s12, 1
    %p84 = scmp.ne.s32.totalorder %s79, %s81
    %p85 = scmp.eq.s32.totalorder %s12, 0
    %p86 = por %p84, %p85
    %p87 = scmp.ne.s32.totalorder %s79, %s81
    %p88 = scmp.eq.s32.totalorder %s17, 1
    %p89 = por %p87, %p88
    %p90 = scmp.ne.s32.totalorder %s81, %s82
    %p91 = scmp.eq.s32.totalorder %s17, 0
    %p92 = por %p90, %p91
    %p93 = scmp.ne.s32.totalorder %s81, %s82
    %p94 = scmp.eq.s32.totalorder %s18, 1
    %p95 = por %p93, %p94
    %p97 = scmp.ne.s32.totalorder %s82, %s96
    %p98 = scmp.eq.s32.totalorder %s18, 0
    %p99 = por %p97, %p98
    %s101 = sadd.s32 %s100, 1
    %p104 = scmp.eq.s32.totalorder %s12, 1
    %p105 = scmp.ne.s32.totalorder %s100, %s102
    %p106 = scmp.eq.s32.totalorder %s12, 0
    %p107 = por %p105, %p106
    %p108 = scmp.ne.s32.totalorder %s100, %s102
    %p109 = scmp.eq.s32.totalorder %s17, 1
    %p110 = por %p108, %p109
    %p111 = scmp.ne.s32.totalorder %s102, %s103
    %p112 = scmp.eq.s32.totalorder %s17, 0
    %p113 = por %p111, %p112
    %p114 = scmp.ne.s32.totalorder %s102, %s103
    %p115 = scmp.eq.s32.totalorder %s18, 1
    %p116 = por %p114, %p115
    %p118 = scmp.ne.s32.totalorder %s103, %s117
    %p119 = scmp.eq.s32.totalorder %s18, 0
    %p120 = por %p118, %p119
    %s122 = sadd.s32 %s121, 1
    %p125 = scmp.eq.s32.totalorder %s12, 1
    %p126 = scmp.ne.s32.totalorder %s121, %s123
    %p127 = scmp.eq.s32.totalorder %s12, 0
    %p128 = por %p126, %p127
    %p129 = scmp.ne.s32.totalorder %s121, %s123
    %p130 = scmp.eq.s32.totalorder %s17, 1
    %p131 = por %p129, %p130
    %p132 = scmp.ne.s32.totalorder %s123, %s124
    %p133 = scmp.eq.s32.totalorder %s17, 0
    %p134 = por %p132, %p133
    %p135 = scmp.ne.s32.totalorder %s123, %s124
    %p136 = scmp.eq.s32.totalorder %s18, 1
    %p137 = por %p135, %p136
    %p139 = scmp.ne.s32.totalorder %s124, %s138
    %p140 = scmp.eq.s32.totalorder %s18, 0
    %p141 = por %p139, %p140
    %s143 = sadd.s32 %s142, 1
    %p146 = scmp.eq.s32.totalorder %s12, 1
    %p147 = scmp.ne.s32.totalorder %s142, %s144
    %p148 = scmp.eq.s32.totalorder %s12, 0
    %p149 = por %p147, %p148
    %p150 = scmp.ne.s32.totalorder %s142, %s144
    %p151 = scmp.eq.s32.totalorder %s17, 1
    %p152 = por %p150, %p151
    %p153 = scmp.ne.s32.totalorder %s144, %s145
    %p154 = scmp.eq.s32.totalorder %s17, 0
    %p155 = por %p153, %p154
    %p156 = scmp.ne.s32.totalorder %s144, %s145
    %p157 = scmp.eq.s32.totalorder %s18, 1
    %p158 = por %p156, %p157
    %p160 = scmp.ne.s32.totalorder %s145, %s159
    %p161 = scmp.eq.s32.totalorder %s18, 0
    %p162 = por %p160, %p161
    %s163 = smul.u32 %s20, %s19
    %s164 = smul.u32 %s27, %s31
    %s165 = ssub.s32 %s163, %s164
    %p166 = scmp.eq.s32.totalorder %s165, 0
    %s168 = sadd.s32 %s167, 1
    %s169 = scalar_select %p166, %s167, %s168
    %p172 = pneg %p166
    %p173 = scmp.eq.s32.totalorder %s12, 1
    %p174 = por %p172, %p173
    %p175 = scmp.ne.s32.totalorder %s167, %s170
    %p176 = scmp.eq.s32.totalorder %s12, 0
    %p177 = por %p175, %p176
    %p178 = scmp.ne.s32.totalorder %s167, %s170
    %p179 = scmp.eq.s32.totalorder %s17, 1
    %p180 = por %p178, %p179
    %p181 = scmp.ne.s32.totalorder %s170, %s171
    %p182 = scmp.eq.s32.totalorder %s17, 0
    %p183 = por %p181, %p182
    %p184 = scmp.ne.s32.totalorder %s170, %s171
    %p185 = scmp.eq.s32.totalorder %s18, 1
    %p186 = por %p184, %p185
    %p188 = scmp.ne.s32.totalorder %s171, %s187
    %p189 = scmp.eq.s32.totalorder %s18, 0
    %p190 = por %p188, %p189
    %p191 = scmp.le.s32.totalorder 1, %s12
    %p192 = scmp.lt.s32.totalorder %s12, 3
    %p193 = pnand %p191, %p192
    %p194 = pneg %p193
    // Predicated region
    $region9: #{tpu_custom_call.1} parent=5 // pred_check
      _
    $region10: #{tpu_custom_call.1} parent=5 // pred_check_branch
      %196 = sbr.rel (%p193) target = $region12
    $region11: #{tpu_custom_call.1} parent=5 // pred_region
      %s197 = ssub.s32 %s12, 1
      // Predicated region
      $region13: #{tpu_custom_call.1} parent=11 // pred_check
        %p198 = pneg %p50
      $region14: #{tpu_custom_call.1} parent=11 // pred_check_branch
        %200 = sbr.rel (%p198) target = $region16
      $region15: #{tpu_custom_call.1} parent=11 // pred_region
        %p201 = scmp.lt.s32.totalorder %s22, 0
        %s202 = scalar_select %p201, %s22, 0
        %s203 = smul.addr %s202, 8
        %s204 = scalar_lea.vmem %s0, %s203
      $region16: #{tpu_custom_call.1} parent=11 // pred_fallthru
        _
      // Predicated region
      $region17: #{tpu_custom_call.1} parent=11 // pred_check
        %p205 = pneg %p71
      $region18: #{tpu_custom_call.1} parent=11 // pred_check_branch
        %207 = sbr.rel (%p205) target = $region20
      $region19: #{tpu_custom_call.1} parent=11 // pred_region
        _
      $region20: #{tpu_custom_call.1} parent=11 // pred_fallthru
        _
      // Predicated region
      $region21: #{tpu_custom_call.1} parent=11 // pred_check
        %p208 = pneg %p92
      $region22: #{tpu_custom_call.1} parent=11 // pred_check_branch
        %210 = sbr.rel (%p208) target = $region24
      $region23: #{tpu_custom_call.1} parent=11 // pred_region
        _
      $region24: #{tpu_custom_call.1} parent=11 // pred_fallthru
        _
      // Predicated region
      $region25: #{tpu_custom_call.1} parent=11 // pred_check
        %p211 = pneg %p113
      $region26: #{tpu_custom_call.1} parent=11 // pred_check_branch
        %213 = sbr.rel (%p211) target = $region28
      $region27: #{tpu_custom_call.1} parent=11 // pred_region
        _
      $region28: #{tpu_custom_call.1} parent=11 // pred_fallthru
        _
      // Predicated region
      $region29: #{tpu_custom_call.1} parent=11 // pred_check
        %p214 = pneg %p134
      $region30: #{tpu_custom_call.1} parent=11 // pred_check_branch
        %216 = sbr.rel (%p214) target = $region32
      $region31: #{tpu_custom_call.1} parent=11 // pred_region
        _
      $region32: #{tpu_custom_call.1} parent=11 // pred_fallthru
        _
      // Predicated region
      $region33: #{tpu_custom_call.1} parent=11 // pred_check
        %p217 = pneg %p155
      $region34: #{tpu_custom_call.1} parent=11 // pred_check_branch
        %219 = sbr.rel (%p217) target = $region36
      $region35: #{tpu_custom_call.1} parent=11 // pred_region
        _
      $region36: #{tpu_custom_call.1} parent=11 // pred_fallthru
        _
    $region12: #{tpu_custom_call.1} parent=5 // pred_fallthru
      _
    %p220 = scmp.lt.s32.totalorder %s12, 2
    // Predicated region
    $region37: #{tpu_custom_call.1} parent=5 // pred_check
      %p221 = pneg %p220
    $region38: #{tpu_custom_call.1} parent=5 // pred_check_branch
      %223 = sbr.rel (%p221) target = $region40
    $region39: #{tpu_custom_call.1} parent=5 // pred_region
      _
    $region40: #{tpu_custom_call.1} parent=5 // pred_fallthru
      _
    %p224 = scmp.le.s32.totalorder 1, %s12
    %p225 = scmp.lt.s32.totalorder %s12, 3
    %p226 = pnand %p224, %p225
    %p227 = pneg %p226
    // Predicated region
    $region41: #{tpu_custom_call.1} parent=5 // pred_check
      _
    $region42: #{tpu_custom_call.1} parent=5 // pred_check_branch
      %229 = sbr.rel (%p226) target = $region44
    $region43: #{tpu_custom_call.1} parent=5 // pred_region
      %s230 = ssub.s32 %s12, 1
      %p231 = scmp.lt.s32.totalorder %s22, 0
      %s232 = scalar_select %p231, %s22, 0
      %s233 = smul.addr %s232, 8
      %s234 = scalar_lea.vmem %s0, %s233
      %p235 = pneg %p50
      %p236 = pneg %p47
      %p237 = pneg %p71
      %p238 = pneg %p68
      %p239 = pneg %p92
      %p240 = pneg %p89
      %p241 = pneg %p113
      %p242 = pneg %p110
      %p243 = pneg %p134
      %p244 = pneg %p131
      %p245 = pneg %p155
      %p246 = pneg %p152
      %p247 = pneg %p183
      %p248 = pneg %p180
      %s249 = smul.u32 %s22, %s21
      %p250 = scmp.lt.s32.totalorder %s249, 0
      %s251 = scalar_select %p250, %s249, 0
      %s252 = smul.addr %s251, 8
      %s253 = scalar_lea.vmem %s6, %s252
      %p254 = scmp.lt.s32.totalorder %s22, 0
      %s255 = scalar_select %p254, %s22, 0
      %s256 = smul.addr %s255, 8
      %s257 = scalar_lea.vmem %s0, %s256
      %s258 = smul.u32 %s22, %s21
      %p259 = scmp.lt.s32.totalorder %s258, 0
      %s260 = scalar_select %p259, %s258, 0
      %s261 = smul.addr %s260, 8
      %s262 = scalar_lea.vmem %s6, %s261
      %s263 = smul.u32 %s22, %s21
      %p265 = scmp.eq.s32.totalorder %s21, 0
      %p266 = scmp.eq.s32.totalorder %s22, 0
      %p267 = pnand %p265, %p266
      %p268 = pneg %p267
      // Predicated region
      $region45: #{tpu_custom_call.1} parent=43 // pred_check
        _
      $region46: #{tpu_custom_call.1} parent=43 // pred_check_branch
        %270 = sbr.rel (%p267) target = $region48
      $region47: #{tpu_custom_call.1} parent=43 // pred_region
        %271 = vst [vmem:[#allocation2] sm:$0x3] 0.0
      $region48: #{tpu_custom_call.1} parent=43 // pred_fallthru
        _
      %v272 = vld [vmem:[%s257] sm:$0xff]
      %v273 = vpack.c.bf16 %v272, %v272
      %v274 = vld [vmem:[%s1] sm:$0xf]
      %v275 = vld [vmem:[%s1 + $0x4] sm:$0xf]
      %v276 = vld [vmem:[%s1 + $0x8] sm:$0xf]
      %v277 = vld [vmem:[%s1 + $0xc] sm:$0xf]
      %v282 = vunpack.c.l.b16 %v274
      %v283 = vunpack.c.l.b16 %v275
      %v284 = vunpack.c.l.b16 %v276
      %v285 = vunpack.c.l.b16 %v277
      %v286 = vpack.c.b16 %v283, %v282
      %v287 = vpack.c.b16 %v285, %v284
      %vm290 = vcmask 261120
      %v292 = vsel %vm290, %v273, 0
      %294 = vmatprep.subr.bf16.mxu0 0
      %295 = vmatpush1.bf16.msra.mxu0 %v286
      %296 = vmatprep.subr.bf16.mxu0 0
      %297 = vmatpush1.bf16.msra.mxu0 %v287
      %298 = vmatprep.subr.bf16.mxu0 0
      %299 = vmatpush1.bf16.msra.mxu0 0
      %300 = vmatprep.subr.bf16.mxu0 0
      %301 = vmatpush1.bf16.msra.mxu0 0
      %302 = vmatprep.subr.bf16.mxu0 0
      %303 = vmatpush1.bf16.msra.mxu0 0
      %304 = vmatprep.subr.bf16.mxu0 0
      %305 = vmatpush1.bf16.msra.mxu0 0
      %306 = vmatprep.subr.bf16.mxu0 0
      %307 = vmatpush1.bf16.msra.mxu0 0
      %308 = vmatprep.subr.bf16.mxu0 0
      %309 = vmatpush1.bf16.msra.mxu0 0
      %310 = vmatprep.subr.bf16.mxu0 0
      %311 = vmatpush1.bf16.msra.mxu0 0
      %312 = vmatprep.subr.bf16.mxu0 0
      %313 = vmatpush1.bf16.msra.mxu0 0
      %314 = vmatprep.subr.bf16.mxu0 0
      %315 = vmatpush1.bf16.msra.mxu0 0
      %316 = vmatprep.subr.bf16.mxu0 0
      %317 = vmatpush1.bf16.msra.mxu0 0
      %318 = vmatprep.subr.bf16.mxu0 0
      %319 = vmatpush1.bf16.msra.mxu0 0
      %320 = vmatprep.subr.bf16.mxu0 0
      %321 = vmatpush1.bf16.msra.mxu0 0
      %322 = vmatprep.subr.bf16.mxu0 0
      %323 = vmatpush1.bf16.msra.mxu0 0
      %324 = vmatprep.subr.bf16.mxu0 0
      %325 = vmatpush1.bf16.msra.mxu0 0
      %326 = vmatprep.mubr.bf16.mxu0 0
      %327 = vmatmul.mubr.bf16.gmra.mrb[0].mxu0 %v292
      %v328 = vpop.f32.mrb[0].mxu0
      %v329 = vadd.f32 0.0, %v328
      %v330 = vpop.f32.mrb[0].mxu0
      %v331 = vpop.f32.mrb[0].mxu0
      %v332 = vpop.f32.mrb[0].mxu0
      %333 = vdwg.mxu0
      // Predicated region
      $region49: #{tpu_custom_call.1} parent=43 // pred_check
        %p334 = pneg %p265
      $region50: #{tpu_custom_call.1} parent=43 // pred_check_branch
        %336 = sbr.rel (%p334) target = $region52
      $region51: #{tpu_custom_call.1} parent=43 // pred_region
        %v337 = vld [vmem:[#allocation2] sm:$0x1]
        %v338 = vrot.slane %v329, 4
        %v339 = vadd.f32 %v329, %v338
        %v340 = vrot.slane %v339, 2
        %v341 = vadd.f32 %v339, %v340
        %v342 = vrot.slane %v341, 1
        %v343 = vadd.f32 %v341, %v342
        %v344 = vadd.f32 %v337, %v343
        %345 = vst [vmem:[#allocation2] sm:$0x1] %v344
        %v346 = vld [vmem:[#allocation2 + $0x1] sm:$0x1]
        %v347 = vmul.f32 %v329, %v329
        %v348 = vrot.slane %v347, 4
        %v349 = vadd.f32 %v347, %v348
        %v350 = vrot.slane %v349, 2
        %v351 = vadd.f32 %v349, %v350
        %v352 = vrot.slane %v351, 1
        %v353 = vadd.f32 %v351, %v352
        %v354 = vadd.f32 %v346, %v353
        %355 = vst [vmem:[#allocation2 + $0x1] sm:$0x1] %v354
      $region52: #{tpu_custom_call.1} parent=43 // pred_fallthru
        _
      %p356 = scmp.eq.s32.totalorder %s21, 1
      %p357 = pnand %p356, %p266
      %p358 = pneg %p357
      // Predicated region
      $region53: #{tpu_custom_call.1} parent=43 // pred_check
        _
      $region54: #{tpu_custom_call.1} parent=43 // pred_check_branch
        %360 = sbr.rel (%p357) target = $region56
      $region55: #{tpu_custom_call.1} parent=43 // pred_region
        %v361 = vld [vmem:[#allocation2] sm:$0x1]
        %v362 = vmul.f32 %v361, 0.125
        %v363 = vld [vmem:[#allocation2 + $0x1] sm:$0x1]
        %v364 = vmul.f32 %v363, 0.125
        %v365 = vmul.f32 %v362, %v362
        %v366 = vsub.f32 %v364, %v365
        %v367 = vmax.f32 %v366, 0.0
        %v368 = vld [vmem:[%s2] sm:$0x1]
        %v369 = vadd.f32 %v367, 1e-05
        %v370 = vrsqrt.pop %v369
        %v371 = vmul.f32 %v368, %v370
        %372 = vst [vmem:[#allocation3] sm:$0x1] %v371
        %v373 = vld [vmem:[%s3] sm:$0x1]
        %v374 = vmul.f32 %v362, %v371
        %v375 = vsub.f32 %v373, %v374
        %376 = vst [vmem:[#allocation3 + $0x1] sm:$0x1] %v375
      $region56: #{tpu_custom_call.1} parent=43 // pred_fallthru
        _
      // Predicated region
      $region57: #{tpu_custom_call.1} parent=43 // pred_check
        %p377 = pneg %p356
      $region58: #{tpu_custom_call.1} parent=43 // pred_check_branch
        %379 = sbr.rel (%p377) target = $region60
      $region59: #{tpu_custom_call.1} parent=43 // pred_region
        %v380 = vld [vmem:[#allocation3] sm:$0x1]
        %v381 = vlaneseq
        %v382 = vshrl.u32 %v381, 7
        %v383 = vsub.s32 0, %v382
        %v384 = vrot.slane %v380, %v383
        %v385 = vmul.f32 %v329, %v384
        %v386 = vld [vmem:[#allocation3 + $0x1] sm:$0x1]
        %v387 = vlaneseq
        %v388 = vshrl.u32 %v387, 7
        %v389 = vsub.s32 0, %v388
        %v390 = vrot.slane %v386, %v389
        %v391 = vadd.f32 %v385, %v390
        %v392 = vmax.f32 %v391, 0.0
        %v393 = vld [vmem:[%s4] sm:$0xff]
        %v394 = vld [vmem:[%s4 + $0x8] sm:$0xff]
        %v395 = vld [vmem:[%s4 + $0x10] sm:$0xff]
        %v396 = vld [vmem:[%s4 + $0x18] sm:$0xff]
        %v397 = vld [vmem:[%s4 + $0x20] sm:$0xff]
        %v398 = vld [vmem:[%s4 + $0x28] sm:$0xff]
        %v399 = vld [vmem:[%s4 + $0x30] sm:$0xff]
        %v400 = vld [vmem:[%s4 + $0x38] sm:$0xff]
        %v401 = vld [vmem:[%s4 + $0x40] sm:$0xff]
        %v402 = vld [vmem:[%s4 + $0x48] sm:$0xff]
        %v403 = vld [vmem:[%s4 + $0x50] sm:$0xff]
        %v404 = vld [vmem:[%s4 + $0x58] sm:$0xff]
        %v405 = vld [vmem:[%s4 + $0x60] sm:$0xff]
        %v406 = vld [vmem:[%s4 + $0x68] sm:$0xff]
        %v407 = vld [vmem:[%s4 + $0x70] sm:$0xff]
        %v408 = vld [vmem:[%s4 + $0x78] sm:$0xff]
        %v409 = vld [vmem:[%s5] sm:$0x1]
        %v411 = vlaneseq
        %v412 = vshrl.u32 %v411, 7
        %v413 = vsub.s32 0, %v412
        %v414 = vrot.slane %v409, %v413
        %416 = vmatprep.subr.mxu0 0.0
        %417 = vmatpush1.msra.mxu0 %v393
        %418 = vmatprep.subr.mxu0 0.0
        %419 = vmatpush1.msra.mxu0 %v394
        %420 = vmatprep.subr.mxu0 0.0
        %421 = vmatpush1.msra.mxu0 %v395
        %422 = vmatprep.subr.mxu0 0.0
        %423 = vmatpush1.msra.mxu0 %v396
        %424 = vmatprep.subr.mxu0 0.0
        %425 = vmatpush1.msra.mxu0 %v397
        %426 = vmatprep.subr.mxu0 0.0
        %427 = vmatpush1.msra.mxu0 %v398
        %428 = vmatprep.subr.mxu0 0.0
        %429 = vmatpush1.msra.mxu0 %v399
        %430 = vmatprep.subr.mxu0 0.0
        %431 = vmatpush1.msra.mxu0 %v400
        %432 = vmatprep.subr.mxu0 0.0
        %433 = vmatpush1.msra.mxu0 %v401
        %434 = vmatprep.subr.mxu0 0.0
        %435 = vmatpush1.msra.mxu0 %v402
        %436 = vmatprep.subr.mxu0 0.0
        %437 = vmatpush1.msra.mxu0 %v403
        %438 = vmatprep.subr.mxu0 0.0
        %439 = vmatpush1.msra.mxu0 %v404
        %440 = vmatprep.subr.mxu0 0.0
        %441 = vmatpush1.msra.mxu0 %v405
        %442 = vmatprep.subr.mxu0 0.0
        %443 = vmatpush1.msra.mxu0 %v406
        %444 = vmatprep.subr.mxu0 0.0
        %445 = vmatpush1.msra.mxu0 %v407
        %446 = vmatprep.subr.mxu0 0.0
        %447 = vmatpush1.msra.mxu0 %v408
        %448 = vmatprep.subr.mxu0 0.0
        %449 = vmatpush1.msra.mxu0 0.0
        %450 = vmatprep.subr.mxu0 0.0
        %451 = vmatpush1.msra.mxu0 0.0
        %452 = vmatprep.subr.mxu0 0.0
        %453 = vmatpush1.msra.mxu0 0.0
        %454 = vmatprep.subr.mxu0 0.0
        %455 = vmatpush1.msra.mxu0 0.0
        %456 = vmatprep.subr.mxu0 0.0
        %457 = vmatpush1.msra.mxu0 0.0
        %458 = vmatprep.subr.mxu0 0.0
        %459 = vmatpush1.msra.mxu0 0.0
        %460 = vmatprep.subr.mxu0 0.0
        %461 = vmatpush1.msra.mxu0 0.0
        %462 = vmatprep.subr.mxu0 0.0
        %463 = vmatpush1.msra.mxu0 0.0
        %464 = vmatprep.subr.mxu0 0.0
        %465 = vmatpush1.msra.mxu0 0.0
        %466 = vmatprep.subr.mxu0 0.0
        %467 = vmatpush1.msra.mxu0 0.0
        %468 = vmatprep.subr.mxu0 0.0
        %469 = vmatpush1.msra.mxu0 0.0
        %470 = vmatprep.subr.mxu0 0.0
        %471 = vmatpush1.msra.mxu0 0.0
        %472 = vmatprep.subr.mxu0 0.0
        %473 = vmatpush1.msra.mxu0 0.0
        %474 = vmatprep.subr.mxu0 0.0
        %475 = vmatpush1.msra.mxu0 0.0
        %476 = vmatprep.subr.mxu0 0.0
        %477 = vmatpush1.msra.mxu0 0.0
        %478 = vmatprep.subr.mxu0 0.0
        %479 = vmatpush1.msra.mxu0 0.0
        %480 = vmatprep.mubr.f32.mxu0 0.0
        %481 = vmatmul.mubr.f32.gmra.mrb[0].mxu0 %v392
        %v482 = vpop.f32.mrb[0].mxu0
        %v483 = vadd.f32 %v414, %v482
        %v484 = vpop.f32.mrb[0].mxu0
        %485 = vdwg.mxu0
        %487 = vrot.lane.b32.xlu0 %v483, 127
        %v488 = vpop.permute.xlu0 %487
        %v490 = vmax.f32 %v483, %v488
        %v491 = vsub.f32 %v483, %v490
        %v492 = vmul.f32 %v491, 1.442695
        %v493 = vpow.pop %v492
        %495 = vrot.lane.b32.xlu0 %v490, 1
        %v496 = vpop.permute.xlu0 %495
        %v498 = vsub.f32 %v483, %v496
        %v499 = vmul.f32 %v498, 1.442695
        %v500 = vpow.pop %v499
        %502 = vrot.lane.b32.xlu0 %v500, 127
        %v503 = vpop.permute.xlu0 %502
        %v505 = vadd.f32 %v493, %v503
        %v506 = vlog2.pop %v505
        %v507 = vmul.f32 %v506, 0.6931472
        %v508 = vadd.f32 %v490, %v507
        %510 = vset.pattern.permute.xlu0 0
        %511 = vperm.xlu0 %510, %v508
        %v512 = vpop.permute.xlu0 %511
        %v514 = vsub.f32 %v483, %v512
        %vm515 = vcmask 15360
        %516 = vst.msk [vmem:[%s262] sm:$0xff] %vm515, %v514
      $region60: #{tpu_custom_call.1} parent=43 // pred_fallthru
        _
      %s517 = smul.u32 %s22, %s21
      %p518 = scmp.lt.s32.totalorder %s517, 0
      %s519 = scalar_select %p518, %s517, 0
      %s520 = smul.addr %s519, 8
      %s521 = scalar_lea.vmem %s6, %s520
      // Predicated region
      $region61: #{tpu_custom_call.1} parent=43 // pred_check
        %p522 = pneg %p180
      $region62: #{tpu_custom_call.1} parent=43 // pred_check_branch
        %524 = sbr.rel (%p522) target = $region64
      $region63: #{tpu_custom_call.1} parent=43 // pred_region
        %s525 = smul.u32 %s22, %s21
      $region64: #{tpu_custom_call.1} parent=43 // pred_fallthru
        _
    $region44: #{tpu_custom_call.1} parent=5 // pred_fallthru
      _
    %p526 = scmp.le.s32.totalorder 2, %s12
    // Predicated region
    $region65: #{tpu_custom_call.1} parent=5 // pred_check
      %p527 = pneg %p526
    $region66: #{tpu_custom_call.1} parent=5 // pred_check_branch
      %529 = sbr.rel (%p527) target = $region68
    $region67: #{tpu_custom_call.1} parent=5 // pred_region
      %s530 = ssub.s32 %s12, 2
      // Predicated region
      $region69: #{tpu_custom_call.1} parent=67 // pred_check
        %p531 = pneg %p186
      $region70: #{tpu_custom_call.1} parent=67 // pred_check_branch
        %533 = sbr.rel (%p531) target = $region72
      $region71: #{tpu_custom_call.1} parent=67 // pred_region
        %s534 = smul.u32 %s24, %s23
        %p535 = scmp.lt.s32.totalorder %s534, 0
        %s536 = scalar_select %p535, %s534, 0
        %s537 = smul.addr %s536, 8
        %s538 = scalar_lea.vmem %s6, %s537
      $region72: #{tpu_custom_call.1} parent=67 // pred_fallthru
        _
    $region68: #{tpu_custom_call.1} parent=5 // pred_fallthru
      _
  $region6: #{tpu_custom_call.1} parent=0 // loop_footer
    %s16 = sadd.s32 1, %s12
  $region7: #{tpu_custom_call.1} parent=0 // loop_footer_branch
    %11 = sbr.rel target = $region3
  $region8: #{tpu_custom_call.1} parent=0 // loop_exit
    _

</llo_original>
